<compile_context>
chip_gen: v7x
topology: tpu7x:2x2x1
jax: 0.10.0
libtpu: 0.0.40
codegen_flags: <defaults>
</compile_context>

<pallas_src>
import math

import numpy as np
import jax
import jax.numpy as jnp
from jax.experimental import pallas as pl
from jax.experimental.pallas import tpu as pltpu


# ---------------------------------------------------------------------------
# Host-side construction of the separable resample matrices (glue, numpy).
# ---------------------------------------------------------------------------
def _sinc(x):
    x = np.asarray(x, dtype=np.float64)
    out = np.ones_like(x)
    nz = x != 0
    out[nz] = np.sin(math.pi * x[nz]) / (math.pi * x[nz])
    return out


def _lanczos(x, a):
    cond = np.logical_and(-a < x, x < a)
    out = np.where(cond, _sinc(x) * _sinc(x / a), 0.0)
    return out / out.sum()


def _ramp(ratio, width):
    n = math.ceil(width / ratio + 1)
    out = np.empty(n, dtype=np.float64)
    cur = 0.0
    for i in range(n):
        out[i] = cur
        cur += ratio
    return np.concatenate([-out[1:][::-1], out])[1:-1]


def _reflect_index(m, h):
    while m < 0 or m >= h:
        if m < 0:
            m = -m
        if m >= h:
            m = 2 * (h - 1) - m
    return m


def _reflect_conv_matrix(kernel, h):
    """Matrix equivalent of reflect-pad + 1-D valid conv (size preserving)."""
    K = len(kernel)
    p = (K - 1) // 2
    L = np.zeros((h, h), dtype=np.float64)
    for i in range(h):
        for j in range(K):
            L[i, _reflect_index(i + j - p, h)] += kernel[j]
    return L


def _cubic_weights(t, A=-0.75):
    def W(x):
        x = abs(x)
        if x <= 1.0:
            return (A + 2.0) * x ** 3 - (A + 3.0) * x ** 2 + 1.0
        elif x < 2.0:
            return A * x ** 3 - 5.0 * A * x ** 2 + 8.0 * A * x - 4.0 * A
        return 0.0

    return [W(t + 1.0), W(t), W(1.0 - t), W(2.0 - t)]


def _bicubic_matrix(d, s, align_corners=True):
    """PyTorch F.interpolate(mode='bicubic', align_corners=True) as a (d, s) matrix."""
    B = np.zeros((d, s), dtype=np.float64)
    for j in range(d):
        if d > 1:
            x = j * (s - 1) / (d - 1) if align_corners else (j + 0.5) * s / d - 0.5
        else:
            x = 0.0
        x0 = math.floor(x)
        t = x - x0
        ws = _cubic_weights(t)
        for k, w in zip(range(-1, 3), ws):
            idx = min(max(x0 + k, 0), s - 1)
            B[j, idx] += w
    return B


def _resample_matrix(d, s):
    """Combined lanczos-antialias (if downscaling) + bicubic interp, (d, s)."""
    B = _bicubic_matrix(d, s, align_corners=True)
    if d < s:
        k = _lanczos(_ramp(d / s, 2), 2)
        L = _reflect_conv_matrix(k, s)
        return B @ L
    return B


def _build_cutout_matrices(cut_size, cutn, sideY, sideX, rng):
    """Per-cutout crop-absorbed resample matrices A_i:(cs,sideY), B_i^T:(sideX,cs)."""
    min_size_width = min(sideX, sideY, cut_size)
    lower_bound = float(cut_size / min_size_width)
    m_cache = {}
    a_all = np.zeros((cutn, cut_size, sideY), dtype=np.float32)
    bt_all = np.zeros((cutn, sideX, cut_size), dtype=np.float32)
    for i in range(cutn):
        # mirrors: int(min_size_width * normal(0.8,0.3).clip(lower_bound, 1.0))
        sz = float(np.clip(rng.normal(0.8, 0.3), lower_bound, 1.0))
        size = max(int(min_size_width * sz), 1)
        offsetx = int(rng.integers(0, sideX - size + 1))
        offsety = int(rng.integers(0, sideY - size + 1))
        if size not in m_cache:
            m_cache[size] = _resample_matrix(cut_size, size)   # (cs, size), shared X/Y
        m = m_cache[size]
        a_all[i, :, offsety:offsety + size] = m                # crop rows absorbed
        bt_all[i, offsetx:offsetx + size, :] = m.T             # crop cols absorbed (host .T)
    return a_all, bt_all


# ---------------------------------------------------------------------------
# Fused Pallas kernel: resample (MXU) + noise + clamp (VPU), one call for all cutouts.
# ---------------------------------------------------------------------------
def _cutouts_kernel(fac_ref, a_ref, bt_ref, x_ref, noise_ref, o_ref):
    i = pl.program_id(0)
    fac = fac_ref[i]                                  # per-cutout noise factor (SMEM scalar)
    a = a_ref[0]                                      # (cs, H)   Y-side crop+resample
    bt = bt_ref[0]                                    # (W, cs)   X-side crop+resample, transposed
    h = a_ref.shape[2]
    nc = noise_ref.shape[1]
    # W-side contraction batched over all N*C planes on the MXU:
    #   (NC*H, W) @ (W, cs) -> (NC*H, cs)
    t = jnp.dot(x_ref[...], bt, preferred_element_type=jnp.float32)
    for n in range(nc):                               # static, N*C is tiny
        out = jnp.dot(a, t[n * h:(n + 1) * h, :],
                      preferred_element_type=jnp.float32)        # (cs, cs)
        o_ref[0, n] = jnp.clip(out + fac * noise_ref[0, n],
                               0.0, 1.0).astype(o_ref.dtype)


def fused_cutouts_pallas(planes2d, a_all, bt_all, facs, noise):
    """planes2d: (NC*H, W); a_all: (cutn, cs, H); bt_all: (cutn, W, cs);
       facs: (cutn,) f32; noise: (cutn, NC, cs, cs)  ->  (cutn, NC, cs, cs)."""
    cutn, cs, H = a_all.shape
    W = bt_all.shape[1]
    nc = noise.shape[1]
    assert planes2d.shape == (nc * H, W)
    return pl.pallas_call(
        _cutouts_kernel,
        out_shape=jax.ShapeDtypeStruct((cutn, nc, cs, cs), planes2d.dtype),
        grid=(cutn,),
        in_specs=[
            pl.BlockSpec(memory_space=pltpu.MemorySpace.SMEM),      # facs (cutn,)
            pl.BlockSpec((1, cs, H), lambda i: (i, 0, 0)),          # A_i
            pl.BlockSpec((1, W, cs), lambda i: (i, 0, 0)),          # B_i^T
            pl.BlockSpec((nc * H, W), lambda i: (0, 0)),            # planes (shared)
            pl.BlockSpec((1, nc, cs, cs), lambda i: (i, 0, 0, 0)),  # noise_i
        ],
        out_specs=pl.BlockSpec((1, nc, cs, cs), lambda i: (i, 0, 0, 0)),
        compiler_params=pltpu.CompilerParams(dimension_semantics=("parallel",)),
    )(facs, a_all, bt_all, planes2d, noise)


# ---------------------------------------------------------------------------
# MakeCutouts forward (Pallas-backed).
# ---------------------------------------------------------------------------
class MakeCutoutsPallas:
    def __init__(self, cut_size, cutn, cut_pow=1.0, noise_fac=0.1, seed=0):
        self.cut_size = cut_size
        self.cutn = cutn
        self.cut_pow = cut_pow          # unused in the reference forward as well
        self.noise_fac = noise_fac
        self._rng = np.random.default_rng(seed)   # host-side size/offset sampling (no device syncs)
        # augments = [[]]  ->  nn.Sequential() == identity (see TODO above)

    def __call__(self, x, key):
        # x layout: NCHW
        N, C, sideY, sideX = x.shape
        cs = self.cut_size

        # Host-built, crop-absorbed resample matrices: fixed shapes -> one compile, one pallas_call.
        a_np, bt_np = _build_cutout_matrices(cs, self.cutn, sideY, sideX, self._rng)
        a_all = jnp.asarray(a_np, dtype=x.dtype)     # (cutn, cs, sideY)
        bt_all = jnp.asarray(bt_np, dtype=x.dtype)   # (cutn, sideX, cs)

        planes2d = x.reshape(N * C * sideY, sideX)   # lane = W, sublane = N*C*H (free reshape)

        if self.noise_fac:
            k_fac, k_noise = jax.random.split(key)
            facs = jax.random.uniform(k_fac, (self.cutn,), dtype=jnp.float32,
                                      minval=0.0, maxval=self.noise_fac)
            noise = jax.random.normal(k_noise, (self.cutn, N * C, cs, cs), dtype=x.dtype)
        else:
            facs = jnp.zeros((self.cutn,), dtype=jnp.float32)
            noise = jnp.zeros((self.cutn, N * C, cs, cs), dtype=x.dtype)

        # NOTE: fac is applied per cutout (the torch broadcast is only valid for N == 1).
        out = fused_cutouts_pallas(planes2d, a_all, bt_all, facs, noise)  # (cutn, N*C, cs, cs)
        return out.reshape(self.cutn * N, C, cs, cs)


if __name__ == "__main__":
    key = jax.random.PRNGKey(0)
    key, kx = jax.random.split(key)
    # layout: NCHW — N=1 (the module's facs broadcast assumes N==1), C=3, 16x16
    x = jax.random.uniform(kx, (1, 3, 16, 16), dtype=jnp.float32)

    mc = MakeCutoutsPallas(cut_size=8, cutn=4, cut_pow=1.0, noise_fac=0.1, seed=0)
    out = mc(x, key)
    out = jax.block_until_ready(out)

    assert out.shape == (4, 3, 8, 8), out.shape
    assert out.dtype == jnp.float32
    assert bool(jnp.all(out >= 0.0)) and bool(jnp.all(out <= 1.0))
    print("KERNEL_OK")
</pallas_src>

<mosaic_0001>
module attributes {stable_mosaic.version = 11 : i64} {
  func.func @_cutouts_kernel(%arg0: i32, %arg1: memref<4xf32, #tpu.memory_space<smem>>, %arg2: memref<1x8x16xf32, #tpu.memory_space<vmem>>, %arg3: memref<1x16x8xf32, #tpu.memory_space<vmem>>, %arg4: memref<48x16xf32, #tpu.memory_space<vmem>>, %arg5: memref<1x3x8x8xf32, #tpu.memory_space<vmem>>, %arg6: memref<1x3x8x8xf32, #tpu.memory_space<vmem>>) attributes {dimension_semantics = [#tpu.dimension_semantics<parallel>], iteration_bounds = array<i64: 4>, scalar_prefetch = 0 : i64, scratch_operands = 0 : i64, tpu.core_type = #tpu.core_type<tc>, window_params = [{transform_indices = @transform_0, window_bounds = array<i64: 4>}, {transform_indices = @transform_1, window_bounds = array<i64: 1, 8, 16>}, {transform_indices = @transform_2, window_bounds = array<i64: 1, 16, 8>}, {pipeline_mode = #tpu.pipeline_mode<synchronous>, transform_indices = @transform_3, window_bounds = array<i64: 48, 16>}, {transform_indices = @transform_4, window_bounds = array<i64: 1, 3, 8, 8>}, {transform_indices = @transform_5, window_bounds = array<i64: 1, 3, 8, 8>}]} {
    %0 = arith.index_cast %arg0 : i32 to index
    %1 = memref.load %arg1[%0] : memref<4xf32, #tpu.memory_space<smem>>
    %c0 = arith.constant 0 : index
    %c0_0 = arith.constant 0 : index
    %c0_1 = arith.constant 0 : index
    %2 = vector.load %arg2[%c0, %c0_0, %c0_1] : memref<1x8x16xf32, #tpu.memory_space<vmem>>, vector<1x8x16xf32>
    %3 = vector.shape_cast %2 : vector<1x8x16xf32> to vector<8x16xf32>
    %c0_2 = arith.constant 0 : index
    %c0_3 = arith.constant 0 : index
    %c0_4 = arith.constant 0 : index
    %4 = vector.load %arg3[%c0_2, %c0_3, %c0_4] : memref<1x16x8xf32, #tpu.memory_space<vmem>>, vector<1x16x8xf32>
    %5 = vector.shape_cast %4 : vector<1x16x8xf32> to vector<16x8xf32>
    %c0_5 = arith.constant 0 : index
    %c0_6 = arith.constant 0 : index
    %6 = vector.load %arg4[%c0_5, %c0_6] : memref<48x16xf32, #tpu.memory_space<vmem>>, vector<48x16xf32>
    %cst = arith.constant dense<0.000000e+00> : vector<48x8xf32>
    %7 = tpu.matmul %6, %5, %cst {dimension_numbers = #tpu.dot_dimension_numbers<[1], [0], [0], [1], [0, 0, 1, 1], [], []>} : vector<48x16xf32>, vector<16x8xf32>, vector<48x8xf32> -> vector<48x8xf32>
    %8 = vector.extract_strided_slice %7 {offsets = [0, 0], sizes = [16, 8], strides = [1, 1]} : vector<48x8xf32> to vector<16x8xf32>
    %cst_7 = arith.constant dense<0.000000e+00> : vector<8x8xf32>
    %9 = tpu.matmul %3, %8, %cst_7 {dimension_numbers = #tpu.dot_dimension_numbers<[1], [0], [0], [1], [0, 0, 1, 1], [], []>} : vector<8x16xf32>, vector<16x8xf32>, vector<8x8xf32> -> vector<8x8xf32>
    %c0_8 = arith.constant 0 : index
    %c0_9 = arith.constant 0 : index
    %c0_10 = arith.constant 0 : index
    %c0_11 = arith.constant 0 : index
    %10 = vector.load %arg5[%c0_8, %c0_9, %c0_10, %c0_11] : memref<1x3x8x8xf32, #tpu.memory_space<vmem>>, vector<1x1x8x8xf32>
    %11 = vector.shape_cast %10 : vector<1x1x8x8xf32> to vector<8x8xf32>
    %12 = vector.broadcast %1 : f32 to vector<8x8xf32>
    %13 = arith.mulf %12, %11 : vector<8x8xf32>
    %14 = arith.addf %9, %13 : vector<8x8xf32>
    %cst_12 = arith.constant 0.000000e+00 : f32
    %cst_13 = arith.constant 1.000000e+00 : f32
    %15 = vector.broadcast %cst_12 : f32 to vector<8x8xf32>
    %16 = arith.maximumf %15, %14 : vector<8x8xf32>
    %17 = vector.broadcast %cst_13 : f32 to vector<8x8xf32>
    %18 = arith.minimumf %17, %16 : vector<8x8xf32>
    %c0_14 = arith.constant 0 : index
    %c0_15 = arith.constant 0 : index
    %c0_16 = arith.constant 0 : index
    %c0_17 = arith.constant 0 : index
    %19 = vector.load %arg6[%c0_14, %c0_15, %c0_16, %c0_17] : memref<1x3x8x8xf32, #tpu.memory_space<vmem>>, vector<1x1x8x8xf32>
    %20 = vector.shape_cast %19 : vector<1x1x8x8xf32> to vector<8x8xf32>
    %21 = vector.shape_cast %18 : vector<8x8xf32> to vector<1x1x8x8xf32>
    tpu.vector_store %arg6[%c0_14, %c0_15, %c0_16, %c0_17], %21 {strides = array<i32>} : memref<1x3x8x8xf32, #tpu.memory_space<vmem>>, vector<1x1x8x8xf32>,
    %22 = vector.extract_strided_slice %7 {offsets = [16, 0], sizes = [16, 8], strides = [1, 1]} : vector<48x8xf32> to vector<16x8xf32>
    %cst_18 = arith.constant dense<0.000000e+00> : vector<8x8xf32>
    %23 = tpu.matmul %3, %22, %cst_18 {dimension_numbers = #tpu.dot_dimension_numbers<[1], [0], [0], [1], [0, 0, 1, 1], [], []>} : vector<8x16xf32>, vector<16x8xf32>, vector<8x8xf32> -> vector<8x8xf32>
    %c0_19 = arith.constant 0 : index
    %c1 = arith.constant 1 : index
    %c0_20 = arith.constant 0 : index
    %c0_21 = arith.constant 0 : index
    %24 = vector.load %arg5[%c0_19, %c1, %c0_20, %c0_21] : memref<1x3x8x8xf32, #tpu.memory_space<vmem>>, vector<1x1x8x8xf32>
    %25 = vector.shape_cast %24 : vector<1x1x8x8xf32> to vector<8x8xf32>
    %26 = vector.broadcast %1 : f32 to vector<8x8xf32>
    %27 = arith.mulf %26, %25 : vector<8x8xf32>
    %28 = arith.addf %23, %27 : vector<8x8xf32>
    %cst_22 = arith.constant 0.000000e+00 : f32
    %cst_23 = arith.constant 1.000000e+00 : f32
    %29 = vector.broadcast %cst_22 : f32 to vector<8x8xf32>
    %30 = arith.maximumf %29, %28 : vector<8x8xf32>
    %31 = vector.broadcast %cst_23 : f32 to vector<8x8xf32>
    %32 = arith.minimumf %31, %30 : vector<8x8xf32>
    %c0_24 = arith.constant 0 : index
    %c1_25 = arith.constant 1 : index
    %c0_26 = arith.constant 0 : index
    %c0_27 = arith.constant 0 : index
    %33 = vector.load %arg6[%c0_24, %c1_25, %c0_26, %c0_27] : memref<1x3x8x8xf32, #tpu.memory_space<vmem>>, vector<1x1x8x8xf32>
    %34 = vector.shape_cast %33 : vector<1x1x8x8xf32> to vector<8x8xf32>
    %35 = vector.shape_cast %32 : vector<8x8xf32> to vector<1x1x8x8xf32>
    tpu.vector_store %arg6[%c0_24, %c1_25, %c0_26, %c0_27], %35 {strides = array<i32>} : memref<1x3x8x8xf32, #tpu.memory_space<vmem>>, vector<1x1x8x8xf32>,
    %36 = vector.extract_strided_slice %7 {offsets = [32, 0], sizes = [16, 8], strides = [1, 1]} : vector<48x8xf32> to vector<16x8xf32>
    %cst_28 = arith.constant dense<0.000000e+00> : vector<8x8xf32>
    %37 = tpu.matmul %3, %36, %cst_28 {dimension_numbers = #tpu.dot_dimension_numbers<[1], [0], [0], [1], [0, 0, 1, 1], [], []>} : vector<8x16xf32>, vector<16x8xf32>, vector<8x8xf32> -> vector<8x8xf32>
    %c0_29 = arith.constant 0 : index
    %c2 = arith.constant 2 : index
    %c0_30 = arith.constant 0 : index
    %c0_31 = arith.constant 0 : index
    %38 = vector.load %arg5[%c0_29, %c2, %c0_30, %c0_31] : memref<1x3x8x8xf32, #tpu.memory_space<vmem>>, vector<1x1x8x8xf32>
    %39 = vector.shape_cast %38 : vector<1x1x8x8xf32> to vector<8x8xf32>
    %40 = vector.broadcast %1 : f32 to vector<8x8xf32>
    %41 = arith.mulf %40, %39 : vector<8x8xf32>
    %42 = arith.addf %37, %41 : vector<8x8xf32>
    %cst_32 = arith.constant 0.000000e+00 : f32
    %cst_33 = arith.constant 1.000000e+00 : f32
    %43 = vector.broadcast %cst_32 : f32 to vector<8x8xf32>
    %44 = arith.maximumf %43, %42 : vector<8x8xf32>
    %45 = vector.broadcast %cst_33 : f32 to vector<8x8xf32>
    %46 = arith.minimumf %45, %44 : vector<8x8xf32>
    %c0_34 = arith.constant 0 : index
    %c2_35 = arith.constant 2 : index
    %c0_36 = arith.constant 0 : index
    %c0_37 = arith.constant 0 : index
    %47 = vector.load %arg6[%c0_34, %c2_35, %c0_36, %c0_37] : memref<1x3x8x8xf32, #tpu.memory_space<vmem>>, vector<1x1x8x8xf32>
    %48 = vector.shape_cast %47 : vector<1x1x8x8xf32> to vector<8x8xf32>
    %49 = vector.shape_cast %46 : vector<8x8xf32> to vector<1x1x8x8xf32>
    tpu.vector_store %arg6[%c0_34, %c2_35, %c0_36, %c0_37], %49 {strides = array<i32>} : memref<1x3x8x8xf32, #tpu.memory_space<vmem>>, vector<1x1x8x8xf32>,
    return
  }
  func.func @transform_0(%arg0: i32) -> i32 {
    %c0_i32 = arith.constant 0 : i32
    %c0_i32_0 = arith.constant 0 : i32
    return %c0_i32 : i32
  }
  func.func @transform_1(%arg0: i32) -> (i32, i32, i32) {
    %c0_i32 = arith.constant 0 : i32
    %c0_i32_0 = arith.constant 0 : i32
    %c0_i32_1 = arith.constant 0 : i32
    return %arg0, %c0_i32, %c0_i32_0 : i32, i32, i32
  }
  func.func @transform_2(%arg0: i32) -> (i32, i32, i32) {
    %c0_i32 = arith.constant 0 : i32
    %c0_i32_0 = arith.constant 0 : i32
    %c0_i32_1 = arith.constant 0 : i32
    return %arg0, %c0_i32, %c0_i32_0 : i32, i32, i32
  }
  func.func @transform_3(%arg0: i32) -> (i32, i32) {
    %c0_i32 = arith.constant 0 : i32
    %c0_i32_0 = arith.constant 0 : i32
    %c0_i32_1 = arith.constant 0 : i32
    return %c0_i32, %c0_i32_0 : i32, i32
  }
  func.func @transform_4(%arg0: i32) -> (i32, i32, i32, i32) {
    %c0_i32 = arith.constant 0 : i32
    %c0_i32_0 = arith.constant 0 : i32
    %c0_i32_1 = arith.constant 0 : i32
    %c0_i32_2 = arith.constant 0 : i32
    return %arg0, %c0_i32, %c0_i32_0, %c0_i32_1 : i32, i32, i32, i32
  }
  func.func @transform_5(%arg0: i32) -> (i32, i32, i32, i32) {
    %c0_i32 = arith.constant 0 : i32
    %c0_i32_0 = arith.constant 0 : i32
    %c0_i32_1 = arith.constant 0 : i32
    %c0_i32_2 = arith.constant 0 : i32
    return %arg0, %c0_i32, %c0_i32_0, %c0_i32_1 : i32, i32, i32, i32
  }
}

</mosaic_0001>

<llo_original>
// kernel: tpu_custom_call.1
$region0: #{tpu_custom_call.1}
  #allocation0 [shape = 'u32[]', space=smem, size = 0x4, offset = 0x4, fixed_abs, tag = 'smem constant byte address 0x4 - core index']
  #allocation1 [shape = 'u32[144,128]{1,0:T(1,128)}', space=vmem, size = 0x12000, scoped, tag = 'internal scratch']
  %s0 = inlined_call_operand.vmem [shape: f32[4], index: 0, kind: input, shape index: {}]
  %s1 = inlined_call_operand.vmem [shape: f32[4,8,16], index: 1, kind: input, shape index: {}]
  %s2 = inlined_call_operand.vmem [shape: f32[4,16,8], index: 2, kind: input, shape index: {}]
  %s3 = inlined_call_operand.vmem [shape: f32[48,16], index: 3, kind: input, shape index: {}]
  %s4 = inlined_call_operand.vmem [shape: f32[4,3,8,8], index: 4, kind: input, shape index: {}]
  %s5 = inlined_call_operand.hbm [shape: f32[4,3,8,8], index: 5, kind: output, shape index: {}]
  %s6 = sld [smem:[#allocation0]]
  $region57: #{tpu_custom_call.1} parent=0
    _
  %s8 = ssub.s32 1, %s6
  %s9 = scalar_select 0, %s8, %s6
  $region1: #{tpu_custom_call.1} parent=0
    #allocation2 [shape = 'u8[512]{0}', space=smem, size = 0x200, scoped, tag = 'input window, operand 0, single buffered']
    #allocation3 [shape = 's32[2]{0}', space=sflag, size = 0x8, scoped, tag = 'scoped memory for tpu_custom_call.1']
    #allocation4 [shape = 's32[2]{0}', space=sflag, size = 0x8, scoped, tag = 'scoped memory for tpu_custom_call.1']
    #allocation5 [shape = 'u8[24576]{0}', space=vmem, size = 0x6000, scoped, tag = 'output window, operand 0']
    %10 = vsyncpa [#allocation4], 0
    %11 = vsyncpa [#allocation3], 0
    %s12 = scalar_lea.sflag [#allocation3], 1
    %13 = vsyncpa %s12, 0
    loop: start=0, step=1, limit=6
    $region2: #{tpu_custom_call.1} parent=1 // loop_pre_header
      _
    $region3: #{tpu_custom_call.1} parent=1 // loop_header
      %s15 = sphi 0, %s19
      %p16 = scmp.ge.s32.totalorder %s15, 6
      %s23 = sphi 0, %s23
      %s25 = sphi 0, %s23
      %s26 = sphi 0, %s25
      %s40 = sphi 0, %s26
      %s46 = sphi 0, %s48
      %s49 = sphi 0, %s46
      %s50 = sphi 0, %s49
      %s66 = sphi 0, %s50
      %s72 = sphi 0, %s74
      %s75 = sphi 0, %s72
      %s76 = sphi 0, %s75
      %s92 = sphi 0, %s76
      %s96 = sphi 0, %s96
      %s98 = sphi 0, %s96
      %s99 = sphi 0, %s98
      %s113 = sphi 0, %s99
      %s119 = sphi 0, %s121
      %s122 = sphi 0, %s119
      %s123 = sphi 0, %s122
      %s139 = sphi 0, %s123
      %s145 = sphi 0, %s147
      %s148 = sphi 0, %s145
      %s149 = sphi 0, %s148
      %s165 = sphi 0, %s149
    $region4: #{tpu_custom_call.1} parent=1 // loop_header_branch
      %18 = sbr.rel (%p16) target = $region8
    $region5: #{tpu_custom_call.1} parent=1 // loop_body
      %s20 = ssub.s32 %s15, 1
      %s21 = ssub.s32 %s15, 2
      %s22 = sadd.s32 %s15, 1
      %s24 = sadd.s32 %s23, 1
      %p27 = scmp.eq.s32.totalorder %s15, 3
      %p28 = scmp.ne.s32.totalorder %s23, %s25
      %p29 = scmp.eq.s32.totalorder %s15, 0
      %p30 = por %p28, %p29
      %p31 = scmp.ne.s32.totalorder %s23, %s25
      %p32 = scmp.eq.s32.totalorder %s20, 3
      %p33 = por %p31, %p32
      %p34 = scmp.ne.s32.totalorder %s25, %s26
      %p35 = scmp.eq.s32.totalorder %s20, 0
      %p36 = por %p34, %p35
      %p37 = scmp.ne.s32.totalorder %s25, %s26
      %p38 = scmp.eq.s32.totalorder %s21, 3
      %p39 = por %p37, %p38
      %p41 = scmp.ne.s32.totalorder %s26, %s40
      %p42 = scmp.eq.s32.totalorder %s21, 0
      %p43 = por %p41, %p42
      %s44 = ssub.s32 %s15, %s22
      %p45 = scmp.eq.s32.totalorder %s44, 0
      %s47 = sadd.s32 %s46, 1
      %s48 = scalar_select %p45, %s46, %s47
      %p51 = pneg %p45
      %p52 = scmp.eq.s32.totalorder %s15, 3
      %p53 = por %p51, %p52
      %p54 = scmp.ne.s32.totalorder %s46, %s49
      %p55 = scmp.eq.s32.totalorder %s15, 0
      %p56 = por %p54, %p55
      %p57 = scmp.ne.s32.totalorder %s46, %s49
      %p58 = scmp.eq.s32.totalorder %s20, 3
      %p59 = por %p57, %p58
      %p60 = scmp.ne.s32.totalorder %s49, %s50
      %p61 = scmp.eq.s32.totalorder %s20, 0
      %p62 = por %p60, %p61
      %p63 = scmp.ne.s32.totalorder %s49, %s50
      %p64 = scmp.eq.s32.totalorder %s21, 3
      %p65 = por %p63, %p64
      %p67 = scmp.ne.s32.totalorder %s50, %s66
      %p68 = scmp.eq.s32.totalorder %s21, 0
      %p69 = por %p67, %p68
      %s70 = ssub.s32 %s15, %s22
      %p71 = scmp.eq.s32.totalorder %s70, 0
      %s73 = sadd.s32 %s72, 1
      %s74 = scalar_select %p71, %s72, %s73
      %p77 = pneg %p71
      %p78 = scmp.eq.s32.totalorder %s15, 3
      %p79 = por %p77, %p78
      %p80 = scmp.ne.s32.totalorder %s72, %s75
      %p81 = scmp.eq.s32.totalorder %s15, 0
      %p82 = por %p80, %p81
      %p83 = scmp.ne.s32.totalorder %s72, %s75
      %p84 = scmp.eq.s32.totalorder %s20, 3
      %p85 = por %p83, %p84
      %p86 = scmp.ne.s32.totalorder %s75, %s76
      %p87 = scmp.eq.s32.totalorder %s20, 0
      %p88 = por %p86, %p87
      %p89 = scmp.ne.s32.totalorder %s75, %s76
      %p90 = scmp.eq.s32.totalorder %s21, 3
      %p91 = por %p89, %p90
      %p93 = scmp.ne.s32.totalorder %s76, %s92
      %p94 = scmp.eq.s32.totalorder %s21, 0
      %p95 = por %p93, %p94
      %s97 = sadd.s32 %s96, 1
      %p100 = scmp.eq.s32.totalorder %s15, 3
      %p101 = scmp.ne.s32.totalorder %s96, %s98
      %p102 = scmp.eq.s32.totalorder %s15, 0
      %p103 = por %p101, %p102
      %p104 = scmp.ne.s32.totalorder %s96, %s98
      %p105 = scmp.eq.s32.totalorder %s20, 3
      %p106 = por %p104, %p105
      %p107 = scmp.ne.s32.totalorder %s98, %s99
      %p108 = scmp.eq.s32.totalorder %s20, 0
      %p109 = por %p107, %p108
      %p110 = scmp.ne.s32.totalorder %s98, %s99
      %p111 = scmp.eq.s32.totalorder %s21, 3
      %p112 = por %p110, %p111
      %p114 = scmp.ne.s32.totalorder %s99, %s113
      %p115 = scmp.eq.s32.totalorder %s21, 0
      %p116 = por %p114, %p115
      %s117 = ssub.s32 %s15, %s22
      %p118 = scmp.eq.s32.totalorder %s117, 0
      %s120 = sadd.s32 %s119, 1
      %s121 = scalar_select %p118, %s119, %s120
      %p124 = pneg %p118
      %p125 = scmp.eq.s32.totalorder %s15, 3
      %p126 = por %p124, %p125
      %p127 = scmp.ne.s32.totalorder %s119, %s122
      %p128 = scmp.eq.s32.totalorder %s15, 0
      %p129 = por %p127, %p128
      %p130 = scmp.ne.s32.totalorder %s119, %s122
      %p131 = scmp.eq.s32.totalorder %s20, 3
      %p132 = por %p130, %p131
      %p133 = scmp.ne.s32.totalorder %s122, %s123
      %p134 = scmp.eq.s32.totalorder %s20, 0
      %p135 = por %p133, %p134
      %p136 = scmp.ne.s32.totalorder %s122, %s123
      %p137 = scmp.eq.s32.totalorder %s21, 3
      %p138 = por %p136, %p137
      %p140 = scmp.ne.s32.totalorder %s123, %s139
      %p141 = scmp.eq.s32.totalorder %s21, 0
      %p142 = por %p140, %p141
      %s143 = ssub.s32 %s15, %s22
      %p144 = scmp.eq.s32.totalorder %s143, 0
      %s146 = sadd.s32 %s145, 1
      %s147 = scalar_select %p144, %s145, %s146
      %p150 = pneg %p144
      %p151 = scmp.eq.s32.totalorder %s15, 3
      %p152 = por %p150, %p151
      %p153 = scmp.ne.s32.totalorder %s145, %s148
      %p154 = scmp.eq.s32.totalorder %s15, 0
      %p155 = por %p153, %p154
      %p156 = scmp.ne.s32.totalorder %s145, %s148
      %p157 = scmp.eq.s32.totalorder %s20, 3
      %p158 = por %p156, %p157
      %p159 = scmp.ne.s32.totalorder %s148, %s149
      %p160 = scmp.eq.s32.totalorder %s20, 0
      %p161 = por %p159, %p160
      %p162 = scmp.ne.s32.totalorder %s148, %s149
      %p163 = scmp.eq.s32.totalorder %s21, 3
      %p164 = por %p162, %p163
      %p166 = scmp.ne.s32.totalorder %s149, %s165
      %p167 = scmp.eq.s32.totalorder %s21, 0
      %p168 = por %p166, %p167
      %p169 = scmp.le.s32.totalorder 1, %s15
      %p170 = scmp.lt.s32.totalorder %s15, 5
      %p171 = pnand %p169, %p170
      %p172 = pneg %p171
      // Predicated region
      $region9: #{tpu_custom_call.1} parent=5 // pred_check
        _
      $region10: #{tpu_custom_call.1} parent=5 // pred_check_branch
        %174 = sbr.rel (%p171) target = $region12
      $region11: #{tpu_custom_call.1} parent=5 // pred_region
        %s175 = ssub.s32 %s15, 1
        // Predicated region
        $region13: #{tpu_custom_call.1} parent=11 // pred_check
          %p176 = pneg %p36
        $region14: #{tpu_custom_call.1} parent=11 // pred_check_branch
          %178 = sbr.rel (%p176) target = $region16
        $region15: #{tpu_custom_call.1} parent=11 // pred_region
          %s180 = ssub.s32 16, 16
          %181 = vsyncadd [#allocation4], %s180
          %s183 = sshll.u32 %s0, 4
          %s184 = int_to_ptr.vmem [resolvable:$true] %s183
          %186 = dma.vmem_to_smem %s184, 16, [#allocation2], [#allocation4]
        $region16: #{tpu_custom_call.1} parent=11 // pred_fallthru
          _
        // Predicated region
        $region17: #{tpu_custom_call.1} parent=11 // pred_check
          %p187 = pneg %p109
        $region18: #{tpu_custom_call.1} parent=11 // pred_check_branch
          %189 = sbr.rel (%p187) target = $region20
        $region19: #{tpu_custom_call.1} parent=11 // pred_region
          _
        $region20: #{tpu_custom_call.1} parent=11 // pred_fallthru
          _
      $region12: #{tpu_custom_call.1} parent=5 // pred_fallthru
        _
      %p190 = scmp.lt.s32.totalorder %s15, 4
      // Predicated region
      $region21: #{tpu_custom_call.1} parent=5 // pred_check
        %p191 = pneg %p190
      $region22: #{tpu_custom_call.1} parent=5 // pred_check_branch
        %193 = sbr.rel (%p191) target = $region24
      $region23: #{tpu_custom_call.1} parent=5 // pred_region
        // Predicated region
        $region25: #{tpu_custom_call.1} parent=23 // pred_check
          %p194 = pneg %p56
        $region26: #{tpu_custom_call.1} parent=23 // pred_check_branch
          %196 = sbr.rel (%p194) target = $region28
        $region27: #{tpu_custom_call.1} parent=23 // pred_region
          %p197 = scmp.lt.s32.totalorder %s15, 3
          %s198 = scalar_select %p197, %s15, 3
          %s199 = smul.addr %s198, 8
          %s200 = scalar_lea.vmem %s1, %s199
        $region28: #{tpu_custom_call.1} parent=23 // pred_fallthru
          _
        // Predicated region
        $region29: #{tpu_custom_call.1} parent=23 // pred_check
          %p201 = pneg %p82
        $region30: #{tpu_custom_call.1} parent=23 // pred_check_branch
          %203 = sbr.rel (%p201) target = $region32
        $region31: #{tpu_custom_call.1} parent=23 // pred_region
          %p204 = scmp.lt.s32.totalorder %s15, 3
          %s205 = scalar_select %p204, %s15, 3
          %s206 = smul.addr %s205, 2
          %s207 = smul.addr %s206, 8
          %s208 = scalar_lea.vmem %s2, %s207
        $region32: #{tpu_custom_call.1} parent=23 // pred_fallthru
          _
        // Predicated region
        $region33: #{tpu_custom_call.1} parent=23 // pred_check
          %p209 = pneg %p129
        $region34: #{tpu_custom_call.1} parent=23 // pred_check_branch
          %211 = sbr.rel (%p209) target = $region36
        $region35: #{tpu_custom_call.1} parent=23 // pred_region
          %p212 = scmp.lt.s32.totalorder %s15, 3
          %s213 = scalar_select %p212, %s15, 3
          %s214 = smul.addr %s213, 3
          %s215 = smul.addr %s214, 8
          %s216 = scalar_lea.vmem %s4, %s215
        $region36: #{tpu_custom_call.1} parent=23 // pred_fallthru
          _
      $region24: #{tpu_custom_call.1} parent=5 // pred_fallthru
        _
      %p217 = scmp.le.s32.totalorder 1, %s15
      %p218 = scmp.lt.s32.totalorder %s15, 5
      %p219 = pnand %p217, %p218
      %p220 = pneg %p219
      // Predicated region
      $region37: #{tpu_custom_call.1} parent=5 // pred_check
        _
      $region38: #{tpu_custom_call.1} parent=5 // pred_check_branch
        %222 = sbr.rel (%p219) target = $region40
      $region39: #{tpu_custom_call.1} parent=5 // pred_region
        %s223 = ssub.s32 %s15, 1
        // Predicated region
        $region41: #{tpu_custom_call.1} parent=39 // pred_check
          %p224 = pneg %p36
        $region42: #{tpu_custom_call.1} parent=39 // pred_check_branch
          %226 = sbr.rel (%p224) target = $region44
        $region43: #{tpu_custom_call.1} parent=39 // pred_region
          %227 = dma.done [#allocation4], 16
        $region44: #{tpu_custom_call.1} parent=39 // pred_fallthru
          _
        %228 = sfence
        %p229 = pneg %p36
        %p230 = pneg %p33
        %p231 = scmp.lt.s32.totalorder %s20, 3
        %s232 = scalar_select %p231, %s20, 3
        %s233 = smul.addr %s232, 8
        %s234 = scalar_lea.vmem %s1, %s233
        %p235 = pneg %p62
        %p236 = pneg %p59
        %p237 = scmp.lt.s32.totalorder %s20, 3
        %s238 = scalar_select %p237, %s20, 3
        %s239 = smul.addr %s238, 2
        %s240 = smul.addr %s239, 8
        %s241 = scalar_lea.vmem %s2, %s240
        %p242 = pneg %p88
        %p243 = pneg %p85
        %p244 = pneg %p109
        %p245 = pneg %p106
        %p246 = scmp.lt.s32.totalorder %s20, 3
        %s247 = scalar_select %p246, %s20, 3
        %s248 = smul.addr %s247, 3
        %s249 = smul.addr %s248, 8
        %s250 = scalar_lea.vmem %s4, %s249
        %p251 = pneg %p135
        %p252 = pneg %p132
        %p253 = pneg %p161
        %p254 = pneg %p158
        %s255 = sand.u32 %s148, 1
        %s256 = scalar_lea.sflag [#allocation3], %s255
        %s257 = sand.u32 %s148, 1
        %s258 = smul.addr %s257, 24
        %s259 = scalar_lea.vmem [#allocation5], %s258
        %p260 = scmp.lt.s32.totalorder %s20, 3
        %s261 = scalar_select %p260, %s20, 3
        %s262 = smul.addr %s261, 8
        %s263 = scalar_lea.vmem %s1, %s262
        %p264 = scmp.lt.s32.totalorder %s20, 3
        %s265 = scalar_select %p264, %s20, 3
        %s266 = smul.addr %s265, 2
        %s267 = smul.addr %s266, 8
        %s268 = scalar_lea.vmem %s2, %s267
        %p269 = scmp.lt.s32.totalorder %s20, 3
        %s270 = scalar_select %p269, %s20, 3
        %s271 = smul.addr %s270, 3
        %s272 = smul.addr %s271, 8
        %s273 = scalar_lea.vmem %s4, %s272
        %s274 = sld [smem:[#allocation2 + %s20]]
        %v275 = vld [vmem:[%s263] sm:$0xff]
        %v276 = vld [vmem:[%s268] sm:$0xff]
        %v277 = vld [vmem:[%s268 + $0x8] sm:$0xff]
        %v278 = vld [vmem:[%s3] sm:$0xff]
        %v279 = vld [vmem:[%s3 + $0x8] sm:$0xff]
        %v280 = vld [vmem:[%s3 + $0x10] sm:$0xff]
        %v281 = vld [vmem:[%s3 + $0x18] sm:$0xff]
        %v282 = vld [vmem:[%s3 + $0x20] sm:$0xff]
        %v283 = vld [vmem:[%s3 + $0x28] sm:$0xff]
        %vm284 = vcmask 130048
        %v286 = vsel %vm284, %v278, 0
        %v289 = vsel %vm284, %v279, 0
        %v292 = vsel %vm284, %v280, 0
        %v295 = vsel %vm284, %v281, 0
        %v298 = vsel %vm284, %v282, 0
        %v301 = vsel %vm284, %v283, 0
        %303 = vmatprep.subr.mxu0 0.0
        %304 = vmatpush1.msra.mxu0 %v276
        %305 = vmatprep.subr.mxu0 0.0
        %306 = vmatpush1.msra.mxu0 %v277
        %307 = vmatprep.subr.mxu0 0.0
        %308 = vmatpush1.msra.mxu0 0.0
        %309 = vmatprep.subr.mxu0 0.0
        %310 = vmatpush1.msra.mxu0 0.0
        %311 = vmatprep.subr.mxu0 0.0
        %312 = vmatpush1.msra.mxu0 0.0
        %313 = vmatprep.subr.mxu0 0.0
        %314 = vmatpush1.msra.mxu0 0.0
        %315 = vmatprep.subr.mxu0 0.0
        %316 = vmatpush1.msra.mxu0 0.0
        %317 = vmatprep.subr.mxu0 0.0
        %318 = vmatpush1.msra.mxu0 0.0
        %319 = vmatprep.subr.mxu0 0.0
        %320 = vmatpush1.msra.mxu0 0.0
        %321 = vmatprep.subr.mxu0 0.0
        %322 = vmatpush1.msra.mxu0 0.0
        %323 = vmatprep.subr.mxu0 0.0
        %324 = vmatpush1.msra.mxu0 0.0
        %325 = vmatprep.subr.mxu0 0.0
        %326 = vmatpush1.msra.mxu0 0.0
        %327 = vmatprep.subr.mxu0 0.0
        %328 = vmatpush1.msra.mxu0 0.0
        %329 = vmatprep.subr.mxu0 0.0
        %330 = vmatpush1.msra.mxu0 0.0
        %331 = vmatprep.subr.mxu0 0.0
        %332 = vmatpush1.msra.mxu0 0.0
        %333 = vmatprep.subr.mxu0 0.0
        %334 = vmatpush1.msra.mxu0 0.0
        %335 = vmatprep.subr.mxu0 0.0
        %336 = vmatpush1.msra.mxu0 0.0
        %337 = vmatprep.subr.mxu0 0.0
        %338 = vmatpush1.msra.mxu0 0.0
        %339 = vmatprep.subr.mxu0 0.0
        %340 = vmatpush1.msra.mxu0 0.0
        %341 = vmatprep.subr.mxu0 0.0
        %342 = vmatpush1.msra.mxu0 0.0
        %343 = vmatprep.subr.mxu0 0.0
        %344 = vmatpush1.msra.mxu0 0.0
        %345 = vmatprep.subr.mxu0 0.0
        %346 = vmatpush1.msra.mxu0 0.0
        %347 = vmatprep.subr.mxu0 0.0
        %348 = vmatpush1.msra.mxu0 0.0
        %349 = vmatprep.subr.mxu0 0.0
        %350 = vmatpush1.msra.mxu0 0.0
        %351 = vmatprep.subr.mxu0 0.0
        %352 = vmatpush1.msra.mxu0 0.0
        %353 = vmatprep.subr.mxu0 0.0
        %354 = vmatpush1.msra.mxu0 0.0
        %355 = vmatprep.subr.mxu0 0.0
        %356 = vmatpush1.msra.mxu0 0.0
        %357 = vmatprep.subr.mxu0 0.0
        %358 = vmatpush1.msra.mxu0 0.0
        %359 = vmatprep.subr.mxu0 0.0
        %360 = vmatpush1.msra.mxu0 0.0
        %361 = vmatprep.subr.mxu0 0.0
        %362 = vmatpush1.msra.mxu0 0.0
        %363 = vmatprep.subr.mxu0 0.0
        %364 = vmatpush1.msra.mxu0 0.0
        %365 = vmatprep.subr.mxu0 0.0
        %366 = vmatpush1.msra.mxu0 0.0
        %367 = vmatprep.mubr.f32.mxu0 0.0
        %368 = vmatmul.mubr.f32.gmra.mrb[0].mxu0 %v286
        %v369 = vpop.f32.mrb[0].mxu0
        %v370 = vadd.f32 0.0, %v369
        %v371 = vpop.f32.mrb[0].mxu0
        %372 = vmatprep.mubr.f32.mxu0 0.0
        %373 = vmatmul.mubr.f32.gmra.mrb[0].mxu0 %v289
        %v374 = vpop.f32.mrb[0].mxu0
        %v375 = vadd.f32 0.0, %v374
        %v376 = vpop.f32.mrb[0].mxu0
        %377 = vmatprep.mubr.f32.mxu0 0.0
        %378 = vmatmul.mubr.f32.gmra.mrb[0].mxu0 %v292
        %v379 = vpop.f32.mrb[0].mxu0
        %v380 = vadd.f32 0.0, %v379
        %v381 = vpop.f32.mrb[0].mxu0
        %382 = vmatprep.mubr.f32.mxu0 0.0
        %383 = vmatmul.mubr.f32.gmra.mrb[0].mxu0 %v295
        %v384 = vpop.f32.mrb[0].mxu0
        %v385 = vadd.f32 0.0, %v384
        %v386 = vpop.f32.mrb[0].mxu0
        %387 = vmatprep.mubr.f32.mxu0 0.0
        %388 = vmatmul.mubr.f32.gmra.mrb[0].mxu0 %v298
        %v389 = vpop.f32.mrb[0].mxu0
        %v390 = vadd.f32 0.0, %v389
        %v391 = vpop.f32.mrb[0].mxu0
        %392 = vmatprep.mubr.f32.mxu0 0.0
        %393 = vmatmul.mubr.f32.gmra.mrb[0].mxu0 %v301
        %v394 = vpop.f32.mrb[0].mxu0
        %v395 = vadd.f32 0.0, %v394
        %v396 = vpop.f32.mrb[0].mxu0
        %397 = vdwg.mxu0
        %v398 = vld [vmem:[%s273] sm:$0xff]
        %v399 = vstv %s274
        %v400 = vmul.f32 %v399, %v398
        %v402 = vsel %vm284, %v275, 0
        %404 = vmatprep.subr.mxu0 0.0
        %405 = vmatpush1.msra.mxu0 %v370
        %406 = vmatprep.subr.mxu0 0.0
        %407 = vmatpush1.msra.mxu0 %v375
        %408 = vmatprep.subr.mxu0 0.0
        %409 = vmatpush1.msra.mxu0 0.0
        %410 = vmatprep.subr.mxu0 0.0
        %411 = vmatpush1.msra.mxu0 0.0
        %412 = vmatprep.subr.mxu0 0.0
        %413 = vmatpush1.msra.mxu0 0.0
        %414 = vmatprep.subr.mxu0 0.0
        %415 = vmatpush1.msra.mxu0 0.0
        %416 = vmatprep.subr.mxu0 0.0
        %417 = vmatpush1.msra.mxu0 0.0
        %418 = vmatprep.subr.mxu0 0.0
        %419 = vmatpush1.msra.mxu0 0.0
        %420 = vmatprep.subr.mxu0 0.0
        %421 = vmatpush1.msra.mxu0 0.0
        %422 = vmatprep.subr.mxu0 0.0
        %423 = vmatpush1.msra.mxu0 0.0
        %424 = vmatprep.subr.mxu0 0.0
        %425 = vmatpush1.msra.mxu0 0.0
        %426 = vmatprep.subr.mxu0 0.0
        %427 = vmatpush1.msra.mxu0 0.0
        %428 = vmatprep.subr.mxu0 0.0
        %429 = vmatpush1.msra.mxu0 0.0
        %430 = vmatprep.subr.mxu0 0.0
        %431 = vmatpush1.msra.mxu0 0.0
        %432 = vmatprep.subr.mxu0 0.0
        %433 = vmatpush1.msra.mxu0 0.0
        %434 = vmatprep.subr.mxu0 0.0
        %435 = vmatpush1.msra.mxu0 0.0
        %436 = vmatprep.subr.mxu0 0.0
        %437 = vmatpush1.msra.mxu0 0.0
        %438 = vmatprep.subr.mxu0 0.0
        %439 = vmatpush1.msra.mxu0 0.0
        %440 = vmatprep.subr.mxu0 0.0
        %441 = vmatpush1.msra.mxu0 0.0
        %442 = vmatprep.subr.mxu0 0.0
        %443 = vmatpush1.msra.mxu0 0.0
        %444 = vmatprep.subr.mxu0 0.0
        %445 = vmatpush1.msra.mxu0 0.0
        %446 = vmatprep.subr.mxu0 0.0
        %447 = vmatpush1.msra.mxu0 0.0
        %448 = vmatprep.subr.mxu0 0.0
        %449 = vmatpush1.msra.mxu0 0.0
        %450 = vmatprep.subr.mxu0 0.0
        %451 = vmatpush1.msra.mxu0 0.0
        %452 = vmatprep.subr.mxu0 0.0
        %453 = vmatpush1.msra.mxu0 0.0
        %454 = vmatprep.subr.mxu0 0.0
        %455 = vmatpush1.msra.mxu0 0.0
        %456 = vmatprep.subr.mxu0 0.0
        %457 = vmatpush1.msra.mxu0 0.0
        %458 = vmatprep.subr.mxu0 0.0
        %459 = vmatpush1.msra.mxu0 0.0
        %460 = vmatprep.subr.mxu0 0.0
        %461 = vmatpush1.msra.mxu0 0.0
        %462 = vmatprep.subr.mxu0 0.0
        %463 = vmatpush1.msra.mxu0 0.0
        %464 = vmatprep.subr.mxu0 0.0
        %465 = vmatpush1.msra.mxu0 0.0
        %466 = vmatprep.subr.mxu0 0.0
        %467 = vmatpush1.msra.mxu0 0.0
        %468 = vmatprep.mubr.f32.mxu0 0.0
        %469 = vmatmul.mubr.f32.gmra.mrb[0].mxu0 %v402
        %v470 = vpop.f32.mrb[0].mxu0
        %v471 = vadd.f32 %v400, %v470
        %v472 = vpop.f32.mrb[0].mxu0
        %473 = vdwg.mxu0
        %v474 = vmax.f32 %v471, 0.0
        %v475 = vmin.f32 %v474, 1.0
        %vm476 = vcmask 64512
        %477 = vst.msk [vmem:[%s259] sm:$0xff] %vm476, %v475
        %s478 = scalar_lea.vmem %s273, 8
        %v479 = vld [vmem:[%s478] sm:$0xff]
        %v480 = vmul.f32 %v399, %v479
        %481 = vmatprep.subr.mxu0 0.0
        %482 = vmatpush1.msra.mxu0 %v380
        %483 = vmatprep.subr.mxu0 0.0
        %484 = vmatpush1.msra.mxu0 %v385
        %485 = vmatprep.subr.mxu0 0.0
        %486 = vmatpush1.msra.mxu0 0.0
        %487 = vmatprep.subr.mxu0 0.0
        %488 = vmatpush1.msra.mxu0 0.0
        %489 = vmatprep.subr.mxu0 0.0
        %490 = vmatpush1.msra.mxu0 0.0
        %491 = vmatprep.subr.mxu0 0.0
        %492 = vmatpush1.msra.mxu0 0.0
        %493 = vmatprep.subr.mxu0 0.0
        %494 = vmatpush1.msra.mxu0 0.0
        %495 = vmatprep.subr.mxu0 0.0
        %496 = vmatpush1.msra.mxu0 0.0
        %497 = vmatprep.subr.mxu0 0.0
        %498 = vmatpush1.msra.mxu0 0.0
        %499 = vmatprep.subr.mxu0 0.0
        %500 = vmatpush1.msra.mxu0 0.0
        %501 = vmatprep.subr.mxu0 0.0
        %502 = vmatpush1.msra.mxu0 0.0
        %503 = vmatprep.subr.mxu0 0.0
        %504 = vmatpush1.msra.mxu0 0.0
        %505 = vmatprep.subr.mxu0 0.0
        %506 = vmatpush1.msra.mxu0 0.0
        %507 = vmatprep.subr.mxu0 0.0
        %508 = vmatpush1.msra.mxu0 0.0
        %509 = vmatprep.subr.mxu0 0.0
        %510 = vmatpush1.msra.mxu0 0.0
        %511 = vmatprep.subr.mxu0 0.0
        %512 = vmatpush1.msra.mxu0 0.0
        %513 = vmatprep.subr.mxu0 0.0
        %514 = vmatpush1.msra.mxu0 0.0
        %515 = vmatprep.subr.mxu0 0.0
        %516 = vmatpush1.msra.mxu0 0.0
        %517 = vmatprep.subr.mxu0 0.0
        %518 = vmatpush1.msra.mxu0 0.0
        %519 = vmatprep.subr.mxu0 0.0
        %520 = vmatpush1.msra.mxu0 0.0
        %521 = vmatprep.subr.mxu0 0.0
        %522 = vmatpush1.msra.mxu0 0.0
        %523 = vmatprep.subr.mxu0 0.0
        %524 = vmatpush1.msra.mxu0 0.0
        %525 = vmatprep.subr.mxu0 0.0
        %526 = vmatpush1.msra.mxu0 0.0
        %527 = vmatprep.subr.mxu0 0.0
        %528 = vmatpush1.msra.mxu0 0.0
        %529 = vmatprep.subr.mxu0 0.0
        %530 = vmatpush1.msra.mxu0 0.0
        %531 = vmatprep.subr.mxu0 0.0
        %532 = vmatpush1.msra.mxu0 0.0
        %533 = vmatprep.subr.mxu0 0.0
        %534 = vmatpush1.msra.mxu0 0.0
        %535 = vmatprep.subr.mxu0 0.0
        %536 = vmatpush1.msra.mxu0 0.0
        %537 = vmatprep.subr.mxu0 0.0
        %538 = vmatpush1.msra.mxu0 0.0
        %539 = vmatprep.subr.mxu0 0.0
        %540 = vmatpush1.msra.mxu0 0.0
        %541 = vmatprep.subr.mxu0 0.0
        %542 = vmatpush1.msra.mxu0 0.0
        %543 = vmatprep.subr.mxu0 0.0
        %544 = vmatpush1.msra.mxu0 0.0
        %545 = vmatprep.mubr.f32.mxu0 0.0
        %546 = vmatmul.mubr.f32.gmra.mrb[0].mxu0 %v402
        %v547 = vpop.f32.mrb[0].mxu0
        %v548 = vadd.f32 %v480, %v547
        %v549 = vpop.f32.mrb[0].mxu0
        %550 = vdwg.mxu0
        %v551 = vmax.f32 %v548, 0.0
        %v552 = vmin.f32 %v551, 1.0
        %s553 = scalar_lea.vmem %s259, 8 [#allocation5]
        %554 = vst.msk [vmem:[%s553] sm:$0xff] %vm476, %v552
        %s555 = scalar_lea.vmem %s273, 16
        %v556 = vld [vmem:[%s555] sm:$0xff]
        %v557 = vmul.f32 %v399, %v556
        %558 = vmatprep.subr.mxu0 0.0
        %559 = vmatpush1.msra.mxu0 %v390
        %560 = vmatprep.subr.mxu0 0.0
        %561 = vmatpush1.msra.mxu0 %v395
        %562 = vmatprep.subr.mxu0 0.0
        %563 = vmatpush1.msra.mxu0 0.0
        %564 = vmatprep.subr.mxu0 0.0
        %565 = vmatpush1.msra.mxu0 0.0
        %566 = vmatprep.subr.mxu0 0.0
        %567 = vmatpush1.msra.mxu0 0.0
        %568 = vmatprep.subr.mxu0 0.0
        %569 = vmatpush1.msra.mxu0 0.0
        %570 = vmatprep.subr.mxu0 0.0
        %571 = vmatpush1.msra.mxu0 0.0
        %572 = vmatprep.subr.mxu0 0.0
        %573 = vmatpush1.msra.mxu0 0.0
        %574 = vmatprep.subr.mxu0 0.0
        %575 = vmatpush1.msra.mxu0 0.0
        %576 = vmatprep.subr.mxu0 0.0
        %577 = vmatpush1.msra.mxu0 0.0
        %578 = vmatprep.subr.mxu0 0.0
        %579 = vmatpush1.msra.mxu0 0.0
        %580 = vmatprep.subr.mxu0 0.0
        %581 = vmatpush1.msra.mxu0 0.0
        %582 = vmatprep.subr.mxu0 0.0
        %583 = vmatpush1.msra.mxu0 0.0
        %584 = vmatprep.subr.mxu0 0.0
        %585 = vmatpush1.msra.mxu0 0.0
        %586 = vmatprep.subr.mxu0 0.0
        %587 = vmatpush1.msra.mxu0 0.0
        %588 = vmatprep.subr.mxu0 0.0
        %589 = vmatpush1.msra.mxu0 0.0
        %590 = vmatprep.subr.mxu0 0.0
        %591 = vmatpush1.msra.mxu0 0.0
        %592 = vmatprep.subr.mxu0 0.0
        %593 = vmatpush1.msra.mxu0 0.0
        %594 = vmatprep.subr.mxu0 0.0
        %595 = vmatpush1.msra.mxu0 0.0
        %596 = vmatprep.subr.mxu0 0.0
        %597 = vmatpush1.msra.mxu0 0.0
        %598 = vmatprep.subr.mxu0 0.0
        %599 = vmatpush1.msra.mxu0 0.0
        %600 = vmatprep.subr.mxu0 0.0
        %601 = vmatpush1.msra.mxu0 0.0
        %602 = vmatprep.subr.mxu0 0.0
        %603 = vmatpush1.msra.mxu0 0.0
        %604 = vmatprep.subr.mxu0 0.0
        %605 = vmatpush1.msra.mxu0 0.0
        %606 = vmatprep.subr.mxu0 0.0
        %607 = vmatpush1.msra.mxu0 0.0
        %608 = vmatprep.subr.mxu0 0.0
        %609 = vmatpush1.msra.mxu0 0.0
        %610 = vmatprep.subr.mxu0 0.0
        %611 = vmatpush1.msra.mxu0 0.0
        %612 = vmatprep.subr.mxu0 0.0
        %613 = vmatpush1.msra.mxu0 0.0
        %614 = vmatprep.subr.mxu0 0.0
        %615 = vmatpush1.msra.mxu0 0.0
        %616 = vmatprep.subr.mxu0 0.0
        %617 = vmatpush1.msra.mxu0 0.0
        %618 = vmatprep.subr.mxu0 0.0
        %619 = vmatpush1.msra.mxu0 0.0
        %620 = vmatprep.subr.mxu0 0.0
        %621 = vmatpush1.msra.mxu0 0.0
        %622 = vmatprep.mubr.f32.mxu0 0.0
        %623 = vmatmul.mubr.f32.gmra.mrb[0].mxu0 %v402
        %v624 = vpop.f32.mrb[0].mxu0
        %v625 = vadd.f32 %v557, %v624
        %v626 = vpop.f32.mrb[0].mxu0
        %627 = vdwg.mxu0
        %v628 = vmax.f32 %v625, 0.0
        %v629 = vmin.f32 %v628, 1.0
        %s630 = scalar_lea.vmem %s259, 16 [#allocation5]
        %631 = vst.msk [vmem:[%s630] sm:$0xff] %vm476, %v629
        %s632 = sand.u32 %s148, 1
        %s633 = scalar_lea.sflag [#allocation3], %s632
        %s634 = sand.u32 %s148, 1
        %s635 = smul.addr %s634, 24
        %s636 = scalar_lea.vmem [#allocation5], %s635
        // Predicated region
        $region45: #{tpu_custom_call.1} parent=39 // pred_check
          %p637 = pneg %p158
        $region46: #{tpu_custom_call.1} parent=39 // pred_check_branch
          %639 = sbr.rel (%p637) target = $region48
        $region47: #{tpu_custom_call.1} parent=39 // pred_region
          %s641 = ssub.s32 384, 384
          %642 = vsyncadd %s633, %s641
          %s643 = smul.addr %s20, 3
          %s644 = smul.addr %s643, 128
          %s645 = scalar_lea.hbm %s5, %s644
          %s646 = sshll.u32 %s636, 4
          %s647 = int_to_ptr.vmem [resolvable:$true] %s646
          %652 = dma.vmem_to_hbm [thread:$0]  %s647, 384, %s645, %s633, 128, 128, 8
        $region48: #{tpu_custom_call.1} parent=39 // pred_fallthru
          _
      $region40: #{tpu_custom_call.1} parent=5 // pred_fallthru
        _
      %p653 = scmp.le.s32.totalorder 2, %s15
      // Predicated region
      $region49: #{tpu_custom_call.1} parent=5 // pred_check
        %p654 = pneg %p653
      $region50: #{tpu_custom_call.1} parent=5 // pred_check_branch
        %656 = sbr.rel (%p654) target = $region52
      $region51: #{tpu_custom_call.1} parent=5 // pred_region
        %s657 = ssub.s32 %s15, 2
        // Predicated region
        $region53: #{tpu_custom_call.1} parent=51 // pred_check
          %p658 = pneg %p164
        $region54: #{tpu_custom_call.1} parent=51 // pred_check_branch
          %660 = sbr.rel (%p658) target = $region56
        $region55: #{tpu_custom_call.1} parent=51 // pred_region
          %s661 = sand.u32 %s149, 1
          %s662 = scalar_lea.sflag [#allocation3], %s661
          %s663 = sand.u32 %s149, 1
          %s664 = smul.addr %s663, 24
          %s665 = scalar_lea.vmem [#allocation5], %s664
          %666 = dma.done %s662, 384
        $region56: #{tpu_custom_call.1} parent=51 // pred_fallthru
          _
      $region52: #{tpu_custom_call.1} parent=5 // pred_fallthru
        _
    $region6: #{tpu_custom_call.1} parent=1 // loop_footer
      %s19 = sadd.s32 1, %s15
    $region7: #{tpu_custom_call.1} parent=1 // loop_footer_branch
      %14 = sbr.rel target = $region3
    $region8: #{tpu_custom_call.1} parent=1 // loop_exit
      _
    %667 = vsyncpa [#allocation3], 1
    %s668 = scalar_lea.sflag [#allocation3], 1
    %669 = vsyncpa %s668, 1
    %670 = vsyncpa [#allocation4], 1
    %s671 = scalar_lea.sflag [#allocation4], 1
    %672 = vsyncpa %s671, 1

</llo_original>
